<compile_context>
chip_gen: v6e
topology: v6e:2x2x1
jax: 0.10.0
libtpu: 0.0.40
codegen_flags: <defaults>
</compile_context>

<pallas_src>
import functools

import jax
import jax.numpy as jnp
from jax.experimental import pallas as pl
from jax.experimental.pallas import tpu as pltpu


def _round_up(x: int, m: int) -> int:
    return (x + m - 1) // m * m


def _vmem_budgets():
    """(tile-selection budget, vmem_limit_bytes), derived from the actual chip."""
    try:
        cap = int(pltpu.get_tpu_info().vmem_capacity_bytes)
    except Exception:            # no TPU visible (e.g. interpret mode) -> conservative
        cap = 64 * 1024 * 1024   # v7x-sized fallback
    return int(cap * 0.40), int(cap * 0.75)


def _choose_tiles(e_pad: int, c_pad: int, in_isz: int, budget: int):
    """Pick (tm, tk, attr_resident) for grid (B, e_pad/tm, e_pad/tk)."""
    tm = 128
    for cand in (512, 256, 128):
        if e_pad % cand == 0:
            tm = cand
            break

    attr_slab = 2 * e_pad * c_pad * in_isz            # double-buffered resident attr slab
    attr_resident = attr_slab <= budget // 2

    tk = 128
    for cand in sorted({c for c in (e_pad, 4096, 2048, 1024, 512, 256, 128)
                        if e_pad % c == 0}, reverse=True):
        adj_bytes = 2 * tm * cand * in_isz            # double-buffered adjacency block
        attr_bytes = attr_slab if attr_resident else 2 * cand * c_pad * in_isz
        out_bytes = 2 * tm * c_pad * 4                # double-buffered f32 accumulator block
        deg_bytes = 2 * 8 * cand * 4                  # tiny per-block count output
        tmp_bytes = 2 * tm * cand * 4                 # mask / indicator temporaries headroom
        if adj_bytes + attr_bytes + out_bytes + deg_bytes + tmp_bytes <= budget:
            tk = cand
            break
    return tm, tk, attr_resident


def _mean_agg_kernel(adj_ref, attr_ref, out_ref, deg_ref, *,
                     E: int, tm: int, tk: int,
                     attr_resident: bool, mask_edges: bool):
    i = pl.program_id(1)   # output row tile
    k = pl.program_id(2)   # reduction slab

    @pl.when(k == 0)
    def _init():
        out_ref[...] = jnp.zeros_like(out_ref)

    adj = adj_ref[...]                                # (tm, tk) — read from HBM exactly once
    if mask_edges:                                    # compiled in only when E % 128 != 0
        rows = i * tm + jax.lax.broadcasted_iota(jnp.int32, (tm, tk), 0)
        cols = k * tk + jax.lax.broadcasted_iota(jnp.int32, (tm, tk), 1)
        adj = jnp.where(jnp.logical_and(rows < E, cols < E), adj, 0)

    if attr_resident:
        attr_blk = attr_ref[pl.ds(k * tk, tk), :]     # slice of the per-batch resident slab
    else:
        attr_blk = attr_ref[...]

    # MXU partial product, accumulated in the k-invariant f32 output block.
    out_ref[...] += jnp.dot(adj, attr_blk, preferred_element_type=jnp.float32)

    # Partial torch.count_nonzero(edge_adj, dim=1): per-column counts of this block.
    # Each (b, i, k) writes its own tiny block -> no cross-step accumulation needed.
    deg_ref[...] = jnp.sum((adj != 0).astype(jnp.float32), axis=0, keepdims=True)


def mean_agg(edge_attr, edge_adj, e_max=None, mask=None, *,
             p: float = 0.0, training: bool = False, seed: int = 0,
             cast_inputs_to_bf16: bool = False):
    """out = (edge_adj @ edge_attr) / (count_nonzero(edge_adj, dim=1)[..., None] + 1),
    then F.dropout(out, p, training). edge_adj: [B,E,E], edge_attr: [B,E,C]."""
    del e_max, mask  # unused by the PyTorch reference forward as well
    assert edge_adj.ndim == 3 and edge_attr.ndim == 3, "expected [B,E,E] and [B,E,C]"
    B, E, E2 = edge_adj.shape
    Ba, Ea, C = edge_attr.shape
    assert E == E2 and Ba == B and Ea == E, "shape mismatch between edge_adj and edge_attr"

    out_dtype = jnp.result_type(edge_adj.dtype, edge_attr.dtype)

    adj, attr = edge_adj, edge_attr
    if cast_inputs_to_bf16:
        # Exact for 0/1 adjacencies; halves the dominant HBM stream. (Values nonzero in
        # f32 but flushing to 0 in bf16 would change the counts — document upstream.)
        adj = adj.astype(jnp.bfloat16)
        attr = attr.astype(jnp.bfloat16)

    e_pad = _round_up(E, 128)
    c_pad = _round_up(C, 128)
    in_isz = max(jnp.dtype(adj.dtype).itemsize, jnp.dtype(attr.dtype).itemsize)
    budget, vmem_limit = _vmem_budgets()
    tm, tk, attr_resident = _choose_tiles(e_pad, c_pad, in_isz, budget)
    mb, kb = e_pad // tm, e_pad // tk
    mask_edges = (e_pad != E)

    # Pad only the small edge_attr; the big adjacency is streamed unpadded and the
    # ragged last row/col tiles are masked inside the kernel.
    if e_pad != E or c_pad != C:
        attr = jnp.pad(attr, ((0, 0), (0, e_pad - E), (0, c_pad - C)))

    if attr_resident:
        attr_spec = pl.BlockSpec((None, e_pad, c_pad), lambda b, i, k: (b, 0, 0))
    else:
        attr_spec = pl.BlockSpec((None, tk, c_pad), lambda b, i, k: (b, k, 0))

    kernel = functools.partial(
        _mean_agg_kernel, E=E, tm=tm, tk=tk,
        attr_resident=attr_resident, mask_edges=mask_edges)

    cost = pl.CostEstimate(
        flops=int(2 * B * e_pad * e_pad * c_pad + 2 * B * e_pad * e_pad),
        transcendentals=0,
        bytes_accessed=int(in_isz * B * e_pad * e_pad
                           + in_isz * B * e_pad * c_pad * (1 if attr_resident else mb)
                           + 4 * B * e_pad * c_pad + 4 * B * mb * e_pad),
    )

    out_mm, deg_part = pl.pallas_call(
        kernel,
        out_shape=(jax.ShapeDtypeStruct((B, e_pad, c_pad), jnp.float32),
                   jax.ShapeDtypeStruct((B, mb, 1, e_pad), jnp.float32)),
        grid_spec=pltpu.PrefetchScalarGridSpec(
            num_scalar_prefetch=0,
            grid=(B, mb, kb),
            in_specs=[
                pl.BlockSpec((None, tm, tk), lambda b, i, k: (b, i, k)),   # adjacency block
                attr_spec,                                                 # edge features
            ],
            out_specs=[
                pl.BlockSpec((None, tm, c_pad), lambda b, i, k: (b, i, 0)),        # matmul acc
                pl.BlockSpec((None, None, 1, tk), lambda b, i, k: (b, i, 0, k)),   # count partials
            ],
        ),
        compiler_params=pltpu.CompilerParams(
            dimension_semantics=("parallel", "parallel", "arbitrary"),
            vmem_limit_bytes=vmem_limit),
        cost_estimate=cost,
    )(adj, attr)

    # Cheap elementwise epilogue (XLA fuses slice + divide + dropout + cast).
    deg = jnp.sum(deg_part[:, :, 0, :E], axis=1)                  # (B, E) column nonzero counts
    out = out_mm[:, :E, :C] / (deg[:, :, None] + 1.0)
    if training and p > 0.0:
        if p >= 1.0:
            out = jnp.zeros_like(out)
        else:
            keep = jax.random.bernoulli(jax.random.PRNGKey(seed), 1.0 - p, out.shape)
            out = jnp.where(keep, out * (1.0 / (1.0 - p)), 0.0)
    return out.astype(out_dtype)


if __name__ == "__main__":
    key = jax.random.PRNGKey(0)
    k1, k2, k3, k4 = jax.random.split(key, 4)

    def reference(adj, attr):
        out = jnp.matmul(adj, attr, precision=jax.lax.Precision.HIGHEST)
        cnt = jnp.count_nonzero(adj, axis=1)
        return out / (cnt[:, :, None] + 1).astype(jnp.float32)

    # --- Test 1: aligned shapes, eval mode (dropout is the identity) -------------
    B, E, C = 2, 256, 128
    edge_adj = (jax.random.uniform(k1, (B, E, E)) < 0.15).astype(jnp.float32)
    edge_attr = jax.random.normal(k2, (B, E, C), dtype=jnp.float32)
    out1 = jax.block_until_ready(mean_agg(edge_attr, edge_adj, p=0.5, training=False))
    ref1 = reference(edge_adj, edge_attr)
    assert out1.shape == (B, E, C)
    assert jnp.allclose(out1, ref1, atol=2e-2, rtol=2e-2), "mismatch vs reference (eval)"

    # --- Test 2: non-aligned E / C exercise the in-kernel ragged-tile masking ----
    B2, E2, C2 = 1, 200, 72
    adj2 = (jax.random.uniform(k3, (B2, E2, E2)) < 0.2).astype(jnp.float32)
    attr2 = jax.random.normal(k4, (B2, E2, C2), dtype=jnp.float32)
    out2 = jax.block_until_ready(mean_agg(attr2, adj2, p=0.3, training=False))
    ref2 = reference(adj2, attr2)
    assert out2.shape == (B2, E2, C2)
    assert jnp.allclose(out2, ref2, atol=2e-2, rtol=2e-2), "mismatch vs reference (ragged)"

    # --- Test 3: training mode — dropout zeroes ~p of entries, scales the rest ---
    out3 = jax.block_until_ready(
        mean_agg(edge_attr, edge_adj, p=0.5, training=True, seed=7))
    drop_frac = float(jnp.mean((out3 == 0.0).astype(jnp.float32)))
    assert 0.35 < drop_frac < 0.65, f"unexpected dropout fraction {drop_frac}"
    kept = out3 != 0.0
    assert jnp.allclose(jnp.where(kept, out3, 0.0), jnp.where(kept, 2.0 * out1, 0.0),
                        atol=1e-4, rtol=1e-4), "dropout scaling mismatch"

    # --- Test 4: bf16 input fast path (0/1 adjacency is exact in bf16) -----------
    out4 = jax.block_until_ready(
        mean_agg(edge_attr, edge_adj, p=0.0, training=False, cast_inputs_to_bf16=True))
    assert out4.dtype == jnp.float32
    assert jnp.allclose(out4, ref1, atol=1e-1, rtol=1e-1), "mismatch vs reference (bf16)"

    print("KERNEL_OK")
</pallas_src>

<mosaic_0001>
module attributes {stable_mosaic.version = 11 : i64} {
  func.func @_mean_agg_kernel(%arg0: i32, %arg1: i32, %arg2: i32, %arg3: memref<1x256x256xf32, #tpu.memory_space<vmem>>, %arg4: memref<1x256x128xf32, #tpu.memory_space<vmem>>, %arg5: memref<1x256x128xf32, #tpu.memory_space<vmem>>, %arg6: memref<1x1x1x256xf32, #tpu.memory_space<vmem>>) attributes {dimension_semantics = [#tpu.dimension_semantics<parallel>, #tpu.dimension_semantics<parallel>, #tpu.dimension_semantics<arbitrary>], iteration_bounds = array<i64: 2, 1, 1>, scalar_prefetch = 0 : i64, scratch_operands = 0 : i64, tpu.core_type = #tpu.core_type<tc>, window_params = [{transform_indices = @transform_0, window_bounds = array<i64: 1, 256, 256>}, {transform_indices = @transform_1, window_bounds = array<i64: 1, 256, 128>}, {transform_indices = @transform_2, window_bounds = array<i64: 1, 256, 128>}, {transform_indices = @transform_3, window_bounds = array<i64: 1, 1, 1, 256>}]} {
    %c0_i32 = arith.constant 0 : i32
    %0 = arith.cmpi eq, %arg2, %c0_i32 : i32
    %1 = arith.extui %0 : i1 to i32
    %c0_i32_0 = arith.constant 0 : i32
    %2 = arith.cmpi ne, %1, %c0_i32_0 : i32
    scf.if %2 {
      %cst_17 = arith.constant 0.000000e+00 : f32
      %25 = vector.broadcast %cst_17 : f32 to vector<256x128xf32>
      %c0_18 = arith.constant 0 : index
      %c0_19 = arith.constant 0 : index
      %c0_20 = arith.constant 0 : index
      %26 = vector.load %arg5[%c0_18, %c0_19, %c0_20] : memref<1x256x128xf32, #tpu.memory_space<vmem>>, vector<1x256x128xf32>
      %27 = vector.shape_cast %26 : vector<1x256x128xf32> to vector<256x128xf32>
      %28 = vector.shape_cast %25 : vector<256x128xf32> to vector<1x256x128xf32>
      tpu.vector_store %arg5[%c0_18, %c0_19, %c0_20], %28 {strides = array<i32>} : memref<1x256x128xf32, #tpu.memory_space<vmem>>, vector<1x256x128xf32>,
    } else {
    }
    %c0 = arith.constant 0 : index
    %c0_1 = arith.constant 0 : index
    %c0_2 = arith.constant 0 : index
    %3 = vector.load %arg3[%c0, %c0_1, %c0_2] : memref<1x256x256xf32, #tpu.memory_space<vmem>>, vector<1x256x256xf32>
    %4 = vector.shape_cast %3 : vector<1x256x256xf32> to vector<256x256xf32>
    %c256_i32 = arith.constant 256 : i32
    %5 = arith.muli %arg2, %c256_i32 : i32
    %c0_3 = arith.constant 0 : index
    %6 = arith.index_cast %5 : i32 to index
    %c0_4 = arith.constant 0 : index
    %7 = vector.load %arg4[%c0_3, %6, %c0_4] : memref<1x256x128xf32, #tpu.memory_space<vmem>>, vector<1x256x128xf32>
    %8 = vector.shape_cast %7 : vector<1x256x128xf32> to vector<256x128xf32>
    %c0_5 = arith.constant 0 : index
    %c0_6 = arith.constant 0 : index
    %c0_7 = arith.constant 0 : index
    %9 = vector.load %arg5[%c0_5, %c0_6, %c0_7] : memref<1x256x128xf32, #tpu.memory_space<vmem>>, vector<1x256x128xf32>
    %10 = vector.shape_cast %9 : vector<1x256x128xf32> to vector<256x128xf32>
    %cst = arith.constant dense<0.000000e+00> : vector<256x128xf32>
    %11 = tpu.matmul %4, %8, %cst {dimension_numbers = #tpu.dot_dimension_numbers<[1], [0], [0], [1], [0, 0, 1, 1], [], []>} : vector<256x256xf32>, vector<256x128xf32>, vector<256x128xf32> -> vector<256x128xf32>
    %12 = arith.addf %10, %11 : vector<256x128xf32>
    %c0_8 = arith.constant 0 : index
    %c0_9 = arith.constant 0 : index
    %c0_10 = arith.constant 0 : index
    %13 = vector.load %arg5[%c0_8, %c0_9, %c0_10] : memref<1x256x128xf32, #tpu.memory_space<vmem>>, vector<1x256x128xf32>
    %14 = vector.shape_cast %13 : vector<1x256x128xf32> to vector<256x128xf32>
    %15 = vector.shape_cast %12 : vector<256x128xf32> to vector<1x256x128xf32>
    tpu.vector_store %arg5[%c0_8, %c0_9, %c0_10], %15 {strides = array<i32>} : memref<1x256x128xf32, #tpu.memory_space<vmem>>, vector<1x256x128xf32>,
    %cst_11 = arith.constant 0.000000e+00 : f32
    %16 = vector.broadcast %cst_11 : f32 to vector<256x256xf32>
    %17 = arith.cmpf one, %4, %16 : vector<256x256xf32>
    %18 = arith.extui %17 : vector<256x256xi1> to vector<256x256xi32>
    %19 = arith.sitofp %18 : vector<256x256xi32> to vector<256x256xf32>
    %cst_12 = arith.constant dense<0.000000e+00> : vector<256xf32>
    %20 = vector.multi_reduction <add>, %19, %cst_12 [0] : vector<256x256xf32> to vector<256xf32>
    %21 = vector.shape_cast %20 : vector<256xf32> to vector<1x256xf32>
    %c0_13 = arith.constant 0 : index
    %c0_14 = arith.constant 0 : index
    %c0_15 = arith.constant 0 : index
    %c0_16 = arith.constant 0 : index
    %22 = vector.load %arg6[%c0_13, %c0_14, %c0_15, %c0_16] : memref<1x1x1x256xf32, #tpu.memory_space<vmem>>, vector<1x1x1x256xf32>
    %23 = vector.shape_cast %22 : vector<1x1x1x256xf32> to vector<1x256xf32>
    %24 = vector.shape_cast %21 : vector<1x256xf32> to vector<1x1x1x256xf32>
    tpu.vector_store %arg6[%c0_13, %c0_14, %c0_15, %c0_16], %24 {strides = array<i32>} : memref<1x1x1x256xf32, #tpu.memory_space<vmem>>, vector<1x1x1x256xf32>,
    return
  }
  func.func @transform_0(%arg0: i32, %arg1: i32, %arg2: i32) -> (i32, i32, i32) {
    %c0_i32 = arith.constant 0 : i32
    return %arg0, %arg1, %arg2 : i32, i32, i32
  }
  func.func @transform_1(%arg0: i32, %arg1: i32, %arg2: i32) -> (i32, i32, i32) {
    %c0_i32 = arith.constant 0 : i32
    %c0_i32_0 = arith.constant 0 : i32
    %c0_i32_1 = arith.constant 0 : i32
    return %arg0, %c0_i32, %c0_i32_0 : i32, i32, i32
  }
  func.func @transform_2(%arg0: i32, %arg1: i32, %arg2: i32) -> (i32, i32, i32) {
    %c0_i32 = arith.constant 0 : i32
    %c0_i32_0 = arith.constant 0 : i32
    return %arg0, %arg1, %c0_i32 : i32, i32, i32
  }
  func.func @transform_3(%arg0: i32, %arg1: i32, %arg2: i32) -> (i32, i32, i32, i32) {
    %c0_i32 = arith.constant 0 : i32
    %c0_i32_0 = arith.constant 0 : i32
    return %arg0, %arg1, %c0_i32, %arg2 : i32, i32, i32, i32
  }
}

</mosaic_0001>

<llo_original>
// kernel: tpu_custom_call.1
$region0: #{tpu_custom_call.1}
  #allocation0 [shape = 'u32[]', space=smem, size = 0x4, offset = 0x4, fixed_abs, tag = 'smem constant byte address 0x4 - core index']
  #allocation1 [shape = 'u32[144,128]{1,0:T(1,128)}', space=vmem, size = 0x12000, scoped, tag = 'internal scratch']
  %s0 = inlined_call_operand.hbm [shape: f32[2,256,256], index: 0, kind: input, shape index: {}]
  %s1 = inlined_call_operand.hbm [shape: f32[2,256,128], index: 1, kind: input, shape index: {}]
  %s2 = inlined_call_operand.hbm [shape: f32[2,256,128], index: 2, kind: output, shape index: {0}]
  %s3 = inlined_call_operand.hbm [shape: f32[2,1,1,256], index: 3, kind: output, shape index: {1}]
  %4 = xla_tuple %s2, %s3
  %s5 = sld [smem:[#allocation0]]
  $region61: #{tpu_custom_call.1} parent=0
    _
  %s7 = ssub.s32 1, %s5
  %s8 = scalar_select 0, %s7, %s5
  $region1: #{tpu_custom_call.1} parent=0
    #allocation2 [shape = 'u8[524288]{0}', space=vmem, size = 0x80000, scoped, tag = 'input window, operand 0']
    #allocation3 [shape = 's32[2]{0}', space=sflag, size = 0x8, scoped, tag = 'scoped memory for tpu_custom_call.1']
    #allocation4 [shape = 's32[2]{0}', space=sflag, size = 0x8, scoped, tag = 'scoped memory for tpu_custom_call.1']
    #allocation5 [shape = 'u8[262144]{0}', space=vmem, size = 0x40000, scoped, tag = 'input window, operand 1']
    #allocation6 [shape = 's32[2]{0}', space=sflag, size = 0x8, scoped, tag = 'scoped memory for tpu_custom_call.1']
    #allocation7 [shape = 'u8[262144]{0}', space=vmem, size = 0x40000, scoped, tag = 'output window, operand 0']
    #allocation8 [shape = 'u8[2048]{0}', space=vmem, size = 0x800, scoped, tag = 'output window, operand 1']
    #allocation9 [shape = 's32[2]{0}', space=sflag, size = 0x8, scoped, tag = 'scoped memory for tpu_custom_call.1']
    %9 = vsyncpa [#allocation3], 0
    %s10 = scalar_lea.sflag [#allocation3], 1
    %11 = vsyncpa %s10, 0
    %12 = vsyncpa [#allocation6], 0
    %s13 = scalar_lea.sflag [#allocation6], 1
    %14 = vsyncpa %s13, 0
    %15 = vsyncpa [#allocation4], 0
    %s16 = scalar_lea.sflag [#allocation4], 1
    %17 = vsyncpa %s16, 0
    %18 = vsyncpa [#allocation9], 0
    %s19 = scalar_lea.sflag [#allocation9], 1
    %20 = vsyncpa %s19, 0
    loop: start=0, step=1, limit=4
    $region2: #{tpu_custom_call.1} parent=1 // loop_pre_header
      _
    $region3: #{tpu_custom_call.1} parent=1 // loop_header
      %s22 = sphi 0, %s26
      %p23 = scmp.ge.s32.totalorder %s22, 4
      %s29 = sphi 0, %s48
      %s30 = sphi 0, %s44
      %s31 = sphi 0, %s40
      %s32 = sphi 0, %s29
      %s33 = sphi 0, %s30
      %s34 = sphi 0, %s31
      %s35 = sphi 0, %s32
      %s36 = sphi 0, %s33
      %s37 = sphi 0, %s34
      %s55 = sphi 0, %s57
      %s58 = sphi 0, %s55
      %s59 = sphi 0, %s58
      %s75 = sphi 0, %s59
      %s81 = sphi 0, %s83
      %s84 = sphi 0, %s81
      %s85 = sphi 0, %s84
      %s101 = sphi 0, %s85
      %s109 = sphi 0, %s111
      %s112 = sphi 0, %s109
      %s113 = sphi 0, %s112
      %s129 = sphi 0, %s113
      %s139 = sphi 0, %s141
      %s142 = sphi 0, %s139
      %s143 = sphi 0, %s142
      %s159 = sphi 0, %s143
    $region4: #{tpu_custom_call.1} parent=1 // loop_header_branch
      %25 = sbr.rel (%p23) target = $region8
    $region5: #{tpu_custom_call.1} parent=1 // loop_body
      %s27 = ssub.s32 %s22, 1
      %s28 = ssub.s32 %s22, 2
      %s38 = sadd.s32 1, %s31
      %p39 = scmp.ge.s32.totalorder %s38, 1
      %s40 = scalar_select %p39, 0, %s38
      %s41 = sadd.s32 1, %s30
      %s42 = scalar_select %p39, %s41, %s30
      %p43 = scmp.ge.s32.totalorder %s42, 1
      %s44 = scalar_select %p43, 0, %s42
      %s45 = sadd.s32 1, %s29
      %s46 = scalar_select %p43, %s45, %s29
      %p47 = scmp.ge.s32.totalorder %s46, 2
      %s48 = scalar_select %p47, 0, %s46
      %s49 = ssub.s32 %s29, %s48
      %s50 = ssub.s32 %s30, %s44
      %s51 = sor.u32 %s49, %s50
      %s52 = ssub.s32 %s31, %s40
      %s53 = sor.u32 %s51, %s52
      %p54 = scmp.eq.s32.totalorder %s53, 0
      %s56 = sadd.s32 %s55, 1
      %s57 = scalar_select %p54, %s55, %s56
      %p60 = pneg %p54
      %p61 = scmp.eq.s32.totalorder %s22, 1
      %p62 = por %p60, %p61
      %p63 = scmp.ne.s32.totalorder %s55, %s58
      %p64 = scmp.eq.s32.totalorder %s22, 0
      %p65 = por %p63, %p64
      %p66 = scmp.ne.s32.totalorder %s55, %s58
      %p67 = scmp.eq.s32.totalorder %s27, 1
      %p68 = por %p66, %p67
      %p69 = scmp.ne.s32.totalorder %s58, %s59
      %p70 = scmp.eq.s32.totalorder %s27, 0
      %p71 = por %p69, %p70
      %p72 = scmp.ne.s32.totalorder %s58, %s59
      %p73 = scmp.eq.s32.totalorder %s28, 1
      %p74 = por %p72, %p73
      %p76 = scmp.ne.s32.totalorder %s59, %s75
      %p77 = scmp.eq.s32.totalorder %s28, 0
      %p78 = por %p76, %p77
      %s79 = ssub.s32 %s29, %s48
      %p80 = scmp.eq.s32.totalorder %s79, 0
      %s82 = sadd.s32 %s81, 1
      %s83 = scalar_select %p80, %s81, %s82
      %p86 = pneg %p80
      %p87 = scmp.eq.s32.totalorder %s22, 1
      %p88 = por %p86, %p87
      %p89 = scmp.ne.s32.totalorder %s81, %s84
      %p90 = scmp.eq.s32.totalorder %s22, 0
      %p91 = por %p89, %p90
      %p92 = scmp.ne.s32.totalorder %s81, %s84
      %p93 = scmp.eq.s32.totalorder %s27, 1
      %p94 = por %p92, %p93
      %p95 = scmp.ne.s32.totalorder %s84, %s85
      %p96 = scmp.eq.s32.totalorder %s27, 0
      %p97 = por %p95, %p96
      %p98 = scmp.ne.s32.totalorder %s84, %s85
      %p99 = scmp.eq.s32.totalorder %s28, 1
      %p100 = por %p98, %p99
      %p102 = scmp.ne.s32.totalorder %s85, %s101
      %p103 = scmp.eq.s32.totalorder %s28, 0
      %p104 = por %p102, %p103
      %s105 = ssub.s32 %s29, %s48
      %s106 = ssub.s32 %s30, %s44
      %s107 = sor.u32 %s105, %s106
      %p108 = scmp.eq.s32.totalorder %s107, 0
      %s110 = sadd.s32 %s109, 1
      %s111 = scalar_select %p108, %s109, %s110
      %p114 = pneg %p108
      %p115 = scmp.eq.s32.totalorder %s22, 1
      %p116 = por %p114, %p115
      %p117 = scmp.ne.s32.totalorder %s109, %s112
      %p118 = scmp.eq.s32.totalorder %s22, 0
      %p119 = por %p117, %p118
      %p120 = scmp.ne.s32.totalorder %s109, %s112
      %p121 = scmp.eq.s32.totalorder %s27, 1
      %p122 = por %p120, %p121
      %p123 = scmp.ne.s32.totalorder %s112, %s113
      %p124 = scmp.eq.s32.totalorder %s27, 0
      %p125 = por %p123, %p124
      %p126 = scmp.ne.s32.totalorder %s112, %s113
      %p127 = scmp.eq.s32.totalorder %s28, 1
      %p128 = por %p126, %p127
      %p130 = scmp.ne.s32.totalorder %s113, %s129
      %p131 = scmp.eq.s32.totalorder %s28, 0
      %p132 = por %p130, %p131
      %s133 = ssub.s32 %s29, %s48
      %s134 = ssub.s32 %s30, %s44
      %s135 = sor.u32 %s133, %s134
      %s136 = ssub.s32 %s31, %s40
      %s137 = sor.u32 %s135, %s136
      %p138 = scmp.eq.s32.totalorder %s137, 0
      %s140 = sadd.s32 %s139, 1
      %s141 = scalar_select %p138, %s139, %s140
      %p144 = pneg %p138
      %p145 = scmp.eq.s32.totalorder %s22, 1
      %p146 = por %p144, %p145
      %p147 = scmp.ne.s32.totalorder %s139, %s142
      %p148 = scmp.eq.s32.totalorder %s22, 0
      %p149 = por %p147, %p148
      %p150 = scmp.ne.s32.totalorder %s139, %s142
      %p151 = scmp.eq.s32.totalorder %s27, 1
      %p152 = por %p150, %p151
      %p153 = scmp.ne.s32.totalorder %s142, %s143
      %p154 = scmp.eq.s32.totalorder %s27, 0
      %p155 = por %p153, %p154
      %p156 = scmp.ne.s32.totalorder %s142, %s143
      %p157 = scmp.eq.s32.totalorder %s28, 1
      %p158 = por %p156, %p157
      %p160 = scmp.ne.s32.totalorder %s143, %s159
      %p161 = scmp.eq.s32.totalorder %s28, 0
      %p162 = por %p160, %p161
      %p163 = scmp.le.s32.totalorder 1, %s22
      %p164 = scmp.lt.s32.totalorder %s22, 3
      %p165 = pnand %p163, %p164
      %p166 = pneg %p165
      // Predicated region
      $region9: #{tpu_custom_call.1} parent=5 // pred_check
        _
      $region10: #{tpu_custom_call.1} parent=5 // pred_check_branch
        %168 = sbr.rel (%p165) target = $region12
      $region11: #{tpu_custom_call.1} parent=5 // pred_region
        %s169 = ssub.s32 %s22, 1
      $region12: #{tpu_custom_call.1} parent=5 // pred_fallthru
        _
      %p170 = scmp.lt.s32.totalorder %s22, 2
      // Predicated region
      $region13: #{tpu_custom_call.1} parent=5 // pred_check
        %p171 = pneg %p170
      $region14: #{tpu_custom_call.1} parent=5 // pred_check_branch
        %173 = sbr.rel (%p171) target = $region16
      $region15: #{tpu_custom_call.1} parent=5 // pred_region
        // Predicated region
        $region17: #{tpu_custom_call.1} parent=15 // pred_check
          %p174 = pneg %p65
        $region18: #{tpu_custom_call.1} parent=15 // pred_check_branch
          %176 = sbr.rel (%p174) target = $region20
        $region19: #{tpu_custom_call.1} parent=15 // pred_region
          %s177 = sand.u32 %s55, 1
          %s178 = scalar_lea.sflag [#allocation3], %s177
          %s179 = sand.u32 %s55, 1
          %s180 = smul.addr %s179, 512
          %s181 = scalar_lea.vmem [#allocation2], %s180
          %s182 = smul.u32 32, %s30
          %s183 = smul.u32 2, %s31
          %s185 = ssub.s32 8192, 8192
          %186 = vsyncadd %s178, %s185
          %s187 = smul.addr %s182, 2
          %s188 = sadd.s32 %s183, %s187
          %s189 = smul.addr %s29, 64
          %s190 = sadd.s32 %s188, %s189
          %s191 = smul.addr %s190, 128
          %s192 = scalar_lea.hbm %s0, %s191
          %s193 = sshll.u32 %s181, 4
          %s194 = int_to_ptr.vmem [resolvable:$true] %s193
          %199 = dma.hbm_to_vmem [thread:$0]  %s192, 8192, %s194, %s178, 256, 256, 16
        $region20: #{tpu_custom_call.1} parent=15 // pred_fallthru
          _
        // Predicated region
        $region21: #{tpu_custom_call.1} parent=15 // pred_check
          %p200 = pneg %p91
        $region22: #{tpu_custom_call.1} parent=15 // pred_check_branch
          %202 = sbr.rel (%p200) target = $region24
        $region23: #{tpu_custom_call.1} parent=15 // pred_region
          %s203 = sand.u32 %s81, 1
          %s204 = scalar_lea.sflag [#allocation6], %s203
          %s205 = sand.u32 %s81, 1
          %s206 = smul.addr %s205, 256
          %s207 = scalar_lea.vmem [#allocation5], %s206
          %s209 = ssub.s32 4096, 4096
          %210 = vsyncadd %s204, %s209
          %s211 = smul.addr %s29, 32
          %s212 = smul.addr %s211, 128
          %s213 = scalar_lea.hbm %s1, %s212
          %s214 = sshll.u32 %s207, 4
          %s215 = int_to_ptr.vmem [resolvable:$true] %s214
          %220 = dma.hbm_to_vmem [thread:$0]  %s213, 4096, %s215, %s204, 128, 128, 8
        $region24: #{tpu_custom_call.1} parent=15 // pred_fallthru
          _
      $region16: #{tpu_custom_call.1} parent=5 // pred_fallthru
        _
      %p221 = scmp.le.s32.totalorder 1, %s22
      %p222 = scmp.lt.s32.totalorder %s22, 3
      %p223 = pnand %p221, %p222
      %p224 = pneg %p223
      // Predicated region
      $region25: #{tpu_custom_call.1} parent=5 // pred_check
        _
      $region26: #{tpu_custom_call.1} parent=5 // pred_check_branch
        %226 = sbr.rel (%p223) target = $region28
      $region27: #{tpu_custom_call.1} parent=5 // pred_region
        %s227 = ssub.s32 %s22, 1
        %s228 = sand.u32 %s58, 1
        %s229 = scalar_lea.sflag [#allocation3], %s228
        %s230 = sand.u32 %s58, 1
        %s231 = smul.addr %s230, 512
        %s232 = scalar_lea.vmem [#allocation2], %s231
        // Predicated region
        $region29: #{tpu_custom_call.1} parent=27 // pred_check
          %p233 = pneg %p71
        $region30: #{tpu_custom_call.1} parent=27 // pred_check_branch
          %235 = sbr.rel (%p233) target = $region32
        $region31: #{tpu_custom_call.1} parent=27 // pred_region
          %236 = dma.done %s229, 8192
        $region32: #{tpu_custom_call.1} parent=27 // pred_fallthru
          _
        %s237 = sand.u32 %s84, 1
        %s238 = scalar_lea.sflag [#allocation6], %s237
        %s239 = sand.u32 %s84, 1
        %s240 = smul.addr %s239, 256
        %s241 = scalar_lea.vmem [#allocation5], %s240
        // Predicated region
        $region33: #{tpu_custom_call.1} parent=27 // pred_check
          %p242 = pneg %p97
        $region34: #{tpu_custom_call.1} parent=27 // pred_check_branch
          %244 = sbr.rel (%p242) target = $region36
        $region35: #{tpu_custom_call.1} parent=27 // pred_region
          %245 = dma.done %s238, 4096
        $region36: #{tpu_custom_call.1} parent=27 // pred_fallthru
          _
        %s246 = sand.u32 %s58, 1
        %s247 = scalar_lea.sflag [#allocation3], %s246
        %s248 = sand.u32 %s58, 1
        %s249 = smul.addr %s248, 512
        %s250 = scalar_lea.vmem [#allocation2], %s249
        %p251 = pneg %p71
        %p252 = pneg %p68
        %s253 = sand.u32 %s84, 1
        %s254 = scalar_lea.sflag [#allocation6], %s253
        %s255 = sand.u32 %s84, 1
        %s256 = smul.addr %s255, 256
        %s257 = scalar_lea.vmem [#allocation5], %s256
        %p258 = pneg %p97
        %p259 = pneg %p94
        %p260 = pneg %p125
        %p261 = pneg %p122
        %s262 = sand.u32 %s112, 1
        %s263 = scalar_lea.sflag [#allocation4], %s262
        %s264 = sand.u32 %s112, 1
        %s265 = smul.addr %s264, 256
        %s266 = scalar_lea.vmem [#allocation7], %s265
        %p267 = pneg %p155
        %p268 = pneg %p152
        %s269 = sand.u32 %s142, 1
        %s270 = scalar_lea.sflag [#allocation9], %s269
        %s271 = sand.u32 %s142, 1
        %s272 = smul.addr %s271, 2
        %s273 = scalar_lea.vmem [#allocation8], %s272
        %s274 = smul.u32 32, %s33
        %s275 = smul.u32 2, %s34
        %s276 = smul.u32 32, %s33
        %s277 = smul.u32 2, %s34
        %p278 = scmp.eq.s32.totalorder %s34, 0
        // Predicated region
        $region37: #{tpu_custom_call.1} parent=27 // pred_check
          %p279 = pneg %p278
        $region38: #{tpu_custom_call.1} parent=27 // pred_check_branch
          %281 = sbr.rel (%p279) target = $region40
        $region39: #{tpu_custom_call.1} parent=27 // pred_region
          %282 = vst [vmem:[%s266] sm:$0xff] 0.0
          %283 = vst [vmem:[%s266 + $0x8] sm:$0xff] 0.0
          %284 = vst [vmem:[%s266 + $0x10] sm:$0xff] 0.0
          %285 = vst [vmem:[%s266 + $0x18] sm:$0xff] 0.0
          %286 = vst [vmem:[%s266 + $0x20] sm:$0xff] 0.0
          %287 = vst [vmem:[%s266 + $0x28] sm:$0xff] 0.0
          %288 = vst [vmem:[%s266 + $0x30] sm:$0xff] 0.0
          %289 = vst [vmem:[%s266 + $0x38] sm:$0xff] 0.0
          %290 = vst [vmem:[%s266 + $0x40] sm:$0xff] 0.0
          %291 = vst [vmem:[%s266 + $0x48] sm:$0xff] 0.0
          %292 = vst [vmem:[%s266 + $0x50] sm:$0xff] 0.0
          %293 = vst [vmem:[%s266 + $0x58] sm:$0xff] 0.0
          %294 = vst [vmem:[%s266 + $0x60] sm:$0xff] 0.0
          %295 = vst [vmem:[%s266 + $0x68] sm:$0xff] 0.0
          %296 = vst [vmem:[%s266 + $0x70] sm:$0xff] 0.0
          %297 = vst [vmem:[%s266 + $0x78] sm:$0xff] 0.0
          %298 = vst [vmem:[%s266 + $0x80] sm:$0xff] 0.0
          %299 = vst [vmem:[%s266 + $0x88] sm:$0xff] 0.0
          %300 = vst [vmem:[%s266 + $0x90] sm:$0xff] 0.0
          %301 = vst [vmem:[%s266 + $0x98] sm:$0xff] 0.0
          %302 = vst [vmem:[%s266 + $0xa0] sm:$0xff] 0.0
          %303 = vst [vmem:[%s266 + $0xa8] sm:$0xff] 0.0
          %304 = vst [vmem:[%s266 + $0xb0] sm:$0xff] 0.0
          %305 = vst [vmem:[%s266 + $0xb8] sm:$0xff] 0.0
          %306 = vst [vmem:[%s266 + $0xc0] sm:$0xff] 0.0
          %307 = vst [vmem:[%s266 + $0xc8] sm:$0xff] 0.0
          %308 = vst [vmem:[%s266 + $0xd0] sm:$0xff] 0.0
          %309 = vst [vmem:[%s266 + $0xd8] sm:$0xff] 0.0
          %310 = vst [vmem:[%s266 + $0xe0] sm:$0xff] 0.0
          %311 = vst [vmem:[%s266 + $0xe8] sm:$0xff] 0.0
          %312 = vst [vmem:[%s266 + $0xf0] sm:$0xff] 0.0
          %313 = vst [vmem:[%s266 + $0xf8] sm:$0xff] 0.0
        $region40: #{tpu_custom_call.1} parent=27 // pred_fallthru
          _
        %v314 = vld [vmem:[%s232] sm:$0xff]
        %v315 = vld [vmem:[%s232 + $0x8] sm:$0xff]
        %v316 = vld [vmem:[%s232 + $0x10] sm:$0xff]
        %v317 = vld [vmem:[%s232 + $0x18] sm:$0xff]
        %v318 = vld [vmem:[%s232 + $0x20] sm:$0xff]
        %v319 = vld [vmem:[%s232 + $0x28] sm:$0xff]
        %v320 = vld [vmem:[%s232 + $0x30] sm:$0xff]
        %v321 = vld [vmem:[%s232 + $0x38] sm:$0xff]
        %v322 = vld [vmem:[%s232 + $0x40] sm:$0xff]
        %v323 = vld [vmem:[%s232 + $0x48] sm:$0xff]
        %v324 = vld [vmem:[%s232 + $0x50] sm:$0xff]
        %v325 = vld [vmem:[%s232 + $0x58] sm:$0xff]
        %v326 = vld [vmem:[%s232 + $0x60] sm:$0xff]
        %v327 = vld [vmem:[%s232 + $0x68] sm:$0xff]
        %v328 = vld [vmem:[%s232 + $0x70] sm:$0xff]
        %v329 = vld [vmem:[%s232 + $0x78] sm:$0xff]
        %v330 = vld [vmem:[%s232 + $0x80] sm:$0xff]
        %v331 = vld [vmem:[%s232 + $0x88] sm:$0xff]
        %v332 = vld [vmem:[%s232 + $0x90] sm:$0xff]
        %v333 = vld [vmem:[%s232 + $0x98] sm:$0xff]
        %v334 = vld [vmem:[%s232 + $0xa0] sm:$0xff]
        %v335 = vld [vmem:[%s232 + $0xa8] sm:$0xff]
        %v336 = vld [vmem:[%s232 + $0xb0] sm:$0xff]
        %v337 = vld [vmem:[%s232 + $0xb8] sm:$0xff]
        %v338 = vld [vmem:[%s232 + $0xc0] sm:$0xff]
        %v339 = vld [vmem:[%s232 + $0xc8] sm:$0xff]
        %v340 = vld [vmem:[%s232 + $0xd0] sm:$0xff]
        %v341 = vld [vmem:[%s232 + $0xd8] sm:$0xff]
        %v342 = vld [vmem:[%s232 + $0xe0] sm:$0xff]
        %v343 = vld [vmem:[%s232 + $0xe8] sm:$0xff]
        %v344 = vld [vmem:[%s232 + $0xf0] sm:$0xff]
        %v345 = vld [vmem:[%s232 + $0xf8] sm:$0xff]
        %v346 = vld [vmem:[%s232 + $0x100] sm:$0xff]
        %v347 = vld [vmem:[%s232 + $0x108] sm:$0xff]
        %v348 = vld [vmem:[%s232 + $0x110] sm:$0xff]
        %v349 = vld [vmem:[%s232 + $0x118] sm:$0xff]
        %v350 = vld [vmem:[%s232 + $0x120] sm:$0xff]
        %v351 = vld [vmem:[%s232 + $0x128] sm:$0xff]
        %v352 = vld [vmem:[%s232 + $0x130] sm:$0xff]
        %v353 = vld [vmem:[%s232 + $0x138] sm:$0xff]
        %v354 = vld [vmem:[%s232 + $0x140] sm:$0xff]
        %v355 = vld [vmem:[%s232 + $0x148] sm:$0xff]
        %v356 = vld [vmem:[%s232 + $0x150] sm:$0xff]
        %v357 = vld [vmem:[%s232 + $0x158] sm:$0xff]
        %v358 = vld [vmem:[%s232 + $0x160] sm:$0xff]
        %v359 = vld [vmem:[%s232 + $0x168] sm:$0xff]
        %v360 = vld [vmem:[%s232 + $0x170] sm:$0xff]
        %v361 = vld [vmem:[%s232 + $0x178] sm:$0xff]
        %v362 = vld [vmem:[%s232 + $0x180] sm:$0xff]
        %v363 = vld [vmem:[%s232 + $0x188] sm:$0xff]
        %v364 = vld [vmem:[%s232 + $0x190] sm:$0xff]
        %v365 = vld [vmem:[%s232 + $0x198] sm:$0xff]
        %v366 = vld [vmem:[%s232 + $0x1a0] sm:$0xff]
        %v367 = vld [vmem:[%s232 + $0x1a8] sm:$0xff]
        %v368 = vld [vmem:[%s232 + $0x1b0] sm:$0xff]
        %v369 = vld [vmem:[%s232 + $0x1b8] sm:$0xff]
        %v370 = vld [vmem:[%s232 + $0x1c0] sm:$0xff]
        %v371 = vld [vmem:[%s232 + $0x1c8] sm:$0xff]
        %v372 = vld [vmem:[%s232 + $0x1d0] sm:$0xff]
        %v373 = vld [vmem:[%s232 + $0x1d8] sm:$0xff]
        %v374 = vld [vmem:[%s232 + $0x1e0] sm:$0xff]
        %v375 = vld [vmem:[%s232 + $0x1e8] sm:$0xff]
        %v376 = vld [vmem:[%s232 + $0x1f0] sm:$0xff]
        %v377 = vld [vmem:[%s232 + $0x1f8] sm:$0xff]
        %s378 = smul.u32 %s34, 256
        %s379 = scalar_lea.vmem %s241, %s378 [#allocation5]
        %v380 = vld [vmem:[%s379] sm:$0xff]
        %v381 = vld [vmem:[%s379 + $0x8] sm:$0xff]
        %v382 = vld [vmem:[%s379 + $0x10] sm:$0xff]
        %v383 = vld [vmem:[%s379 + $0x18] sm:$0xff]
        %v384 = vld [vmem:[%s379 + $0x20] sm:$0xff]
        %v385 = vld [vmem:[%s379 + $0x28] sm:$0xff]
        %v386 = vld [vmem:[%s379 + $0x30] sm:$0xff]
        %v387 = vld [vmem:[%s379 + $0x38] sm:$0xff]
        %v388 = vld [vmem:[%s379 + $0x40] sm:$0xff]
        %v389 = vld [vmem:[%s379 + $0x48] sm:$0xff]
        %v390 = vld [vmem:[%s379 + $0x50] sm:$0xff]
        %v391 = vld [vmem:[%s379 + $0x58] sm:$0xff]
        %v392 = vld [vmem:[%s379 + $0x60] sm:$0xff]
        %v393 = vld [vmem:[%s379 + $0x68] sm:$0xff]
        %v394 = vld [vmem:[%s379 + $0x70] sm:$0xff]
        %v395 = vld [vmem:[%s379 + $0x78] sm:$0xff]
        %v396 = vld [vmem:[%s379 + $0x80] sm:$0xff]
        %v397 = vld [vmem:[%s379 + $0x88] sm:$0xff]
        %v398 = vld [vmem:[%s379 + $0x90] sm:$0xff]
        %v399 = vld [vmem:[%s379 + $0x98] sm:$0xff]
        %v400 = vld [vmem:[%s379 + $0xa0] sm:$0xff]
        %v401 = vld [vmem:[%s379 + $0xa8] sm:$0xff]
        %v402 = vld [vmem:[%s379 + $0xb0] sm:$0xff]
        %v403 = vld [vmem:[%s379 + $0xb8] sm:$0xff]
        %v404 = vld [vmem:[%s379 + $0xc0] sm:$0xff]
        %v405 = vld [vmem:[%s379 + $0xc8] sm:$0xff]
        %v406 = vld [vmem:[%s379 + $0xd0] sm:$0xff]
        %v407 = vld [vmem:[%s379 + $0xd8] sm:$0xff]
        %v408 = vld [vmem:[%s379 + $0xe0] sm:$0xff]
        %v409 = vld [vmem:[%s379 + $0xe8] sm:$0xff]
        %v410 = vld [vmem:[%s379 + $0xf0] sm:$0xff]
        %v411 = vld [vmem:[%s379 + $0xf8] sm:$0xff]
        %v412 = vld [vmem:[%s266] sm:$0xff]
        %v413 = vld [vmem:[%s266 + $0x8] sm:$0xff]
        %v414 = vld [vmem:[%s266 + $0x10] sm:$0xff]
        %v415 = vld [vmem:[%s266 + $0x18] sm:$0xff]
        %v416 = vld [vmem:[%s266 + $0x20] sm:$0xff]
        %v417 = vld [vmem:[%s266 + $0x28] sm:$0xff]
        %v418 = vld [vmem:[%s266 + $0x30] sm:$0xff]
        %v419 = vld [vmem:[%s266 + $0x38] sm:$0xff]
        %v420 = vld [vmem:[%s266 + $0x40] sm:$0xff]
        %v421 = vld [vmem:[%s266 + $0x48] sm:$0xff]
        %v422 = vld [vmem:[%s266 + $0x50] sm:$0xff]
        %v423 = vld [vmem:[%s266 + $0x58] sm:$0xff]
        %v424 = vld [vmem:[%s266 + $0x60] sm:$0xff]
        %v425 = vld [vmem:[%s266 + $0x68] sm:$0xff]
        %v426 = vld [vmem:[%s266 + $0x70] sm:$0xff]
        %v427 = vld [vmem:[%s266 + $0x78] sm:$0xff]
        %v428 = vld [vmem:[%s266 + $0x80] sm:$0xff]
        %v429 = vld [vmem:[%s266 + $0x88] sm:$0xff]
        %v430 = vld [vmem:[%s266 + $0x90] sm:$0xff]
        %v431 = vld [vmem:[%s266 + $0x98] sm:$0xff]
        %v432 = vld [vmem:[%s266 + $0xa0] sm:$0xff]
        %v433 = vld [vmem:[%s266 + $0xa8] sm:$0xff]
        %v434 = vld [vmem:[%s266 + $0xb0] sm:$0xff]
        %v435 = vld [vmem:[%s266 + $0xb8] sm:$0xff]
        %v436 = vld [vmem:[%s266 + $0xc0] sm:$0xff]
        %v437 = vld [vmem:[%s266 + $0xc8] sm:$0xff]
        %v438 = vld [vmem:[%s266 + $0xd0] sm:$0xff]
        %v439 = vld [vmem:[%s266 + $0xd8] sm:$0xff]
        %v440 = vld [vmem:[%s266 + $0xe0] sm:$0xff]
        %v441 = vld [vmem:[%s266 + $0xe8] sm:$0xff]
        %v442 = vld [vmem:[%s266 + $0xf0] sm:$0xff]
        %v443 = vld [vmem:[%s266 + $0xf8] sm:$0xff]
        %444 = vmatprep.subr.mxu0 0.0
        %445 = vmatpush1.msra.mxu0 %v395
        %446 = vmatprep.subr.mxu0 0.0
        %447 = vmatpush1.msra.mxu0 %v394
        %448 = vmatprep.subr.mxu0 0.0
        %449 = vmatpush1.msra.mxu0 %v393
        %450 = vmatprep.subr.mxu0 0.0
        %451 = vmatpush1.msra.mxu0 %v392
        %452 = vmatprep.subr.mxu0 0.0
        %453 = vmatpush1.msra.mxu0 %v391
        %454 = vmatprep.subr.mxu0 0.0
        %455 = vmatpush1.msra.mxu0 %v390
        %456 = vmatprep.subr.mxu0 0.0
        %457 = vmatpush1.msra.mxu0 %v389
        %458 = vmatprep.subr.mxu0 0.0
        %459 = vmatpush1.msra.mxu0 %v388
        %460 = vmatprep.subr.mxu0 0.0
        %461 = vmatpush1.msra.mxu0 %v387
        %462 = vmatprep.subr.mxu0 0.0
        %463 = vmatpush1.msra.mxu0 %v386
        %464 = vmatprep.subr.mxu0 0.0
        %465 = vmatpush1.msra.mxu0 %v385
        %466 = vmatprep.subr.mxu0 0.0
        %467 = vmatpush1.msra.mxu0 %v384
        %468 = vmatprep.subr.mxu0 0.0
        %469 = vmatpush1.msra.mxu0 %v383
        %470 = vmatprep.subr.mxu0 0.0
        %471 = vmatpush1.msra.mxu0 %v382
        %472 = vmatprep.subr.mxu0 0.0
        %473 = vmatpush1.msra.mxu0 %v381
        %474 = vmatprep.subr.mxu0 0.0
        %475 = vmatpush1.msra.mxu0 %v380
        %476 = vmatprep.subr.mxu0 0.0
        %477 = vmatpush2.msra.mxu0 %v411
        %478 = vmatprep.subr.mxu0 0.0
        %479 = vmatpush2.msra.mxu0 %v410
        %480 = vmatprep.subr.mxu0 0.0
        %481 = vmatpush2.msra.mxu0 %v409
        %482 = vmatprep.subr.mxu0 0.0
        %483 = vmatpush2.msra.mxu0 %v408
        %484 = vmatprep.subr.mxu0 0.0
        %485 = vmatpush2.msra.mxu0 %v407
        %486 = vmatprep.subr.mxu0 0.0
        %487 = vmatpush2.msra.mxu0 %v406
        %488 = vmatprep.subr.mxu0 0.0
        %489 = vmatpush2.msra.mxu0 %v405
        %490 = vmatprep.subr.mxu0 0.0
        %491 = vmatpush2.msra.mxu0 %v404
        %492 = vmatprep.subr.mxu0 0.0
        %493 = vmatpush2.msra.mxu0 %v403
        %494 = vmatprep.subr.mxu0 0.0
        %495 = vmatpush2.msra.mxu0 %v402
        %496 = vmatprep.subr.mxu0 0.0
        %497 = vmatpush2.msra.mxu0 %v401
        %498 = vmatprep.subr.mxu0 0.0
        %499 = vmatpush2.msra.mxu0 %v400
        %500 = vmatprep.subr.mxu0 0.0
        %501 = vmatpush2.msra.mxu0 %v399
        %502 = vmatprep.subr.mxu0 0.0
        %503 = vmatpush2.msra.mxu0 %v398
        %504 = vmatprep.subr.mxu0 0.0
        %505 = vmatpush2.msra.mxu0 %v397
        %506 = vmatprep.subr.mxu0 0.0
        %507 = vmatpush2.msra.mxu0 %v396
        %508 = vmatprep.mubr.f32.mxu0 %v315
        %509 = vmatmul.mubr.f32.gmra.mxu0 %v314
        %v510 = vpop.f32.mrf.mxu0
        %v511 = vadd.f32 0.0, %v510
        %v512 = vpop.f32.mrf.mxu0
        %513 = vmatprep.mubr.f32.mxu0 %v317
        %514 = vmatmul.mubr.f32.gmra.mxu0 %v316
        %v515 = vpop.f32.mrf.mxu0
        %v516 = vadd.f32 0.0, %v515
        %v517 = vpop.f32.mrf.mxu0
        %518 = vmatprep.mubr.f32.mxu0 %v319
        %519 = vmatmul.mubr.f32.gmra.mxu0 %v318
        %v520 = vpop.f32.mrf.mxu0
        %v521 = vadd.f32 0.0, %v520
        %v522 = vpop.f32.mrf.mxu0
        %523 = vmatprep.mubr.f32.mxu0 %v321
        %524 = vmatmul.mubr.f32.gmra.mxu0 %v320
        %v525 = vpop.f32.mrf.mxu0
        %v526 = vadd.f32 0.0, %v525
        %v527 = vpop.f32.mrf.mxu0
        %528 = vmatprep.mubr.f32.mxu0 %v323
        %529 = vmatmul.mubr.f32.gmra.mxu0 %v322
        %v530 = vpop.f32.mrf.mxu0
        %v531 = vadd.f32 0.0, %v530
        %v532 = vpop.f32.mrf.mxu0
        %533 = vmatprep.mubr.f32.mxu0 %v325
        %534 = vmatmul.mubr.f32.gmra.mxu0 %v324
        %v535 = vpop.f32.mrf.mxu0
        %v536 = vadd.f32 0.0, %v535
        %v537 = vpop.f32.mrf.mxu0
        %538 = vmatprep.mubr.f32.mxu0 %v327
        %539 = vmatmul.mubr.f32.gmra.mxu0 %v326
        %v540 = vpop.f32.mrf.mxu0
        %v541 = vadd.f32 0.0, %v540
        %v542 = vpop.f32.mrf.mxu0
        %543 = vmatprep.mubr.f32.mxu0 %v329
        %544 = vmatmul.mubr.f32.gmra.mxu0 %v328
        %v545 = vpop.f32.mrf.mxu0
        %v546 = vadd.f32 0.0, %v545
        %v547 = vpop.f32.mrf.mxu0
        %548 = vmatprep.mubr.f32.mxu0 %v331
        %549 = vmatmul.mubr.f32.gmra.mxu0 %v330
        %v550 = vpop.f32.mrf.mxu0
        %v551 = vadd.f32 0.0, %v550
        %v552 = vpop.f32.mrf.mxu0
        %553 = vmatprep.mubr.f32.mxu0 %v333
        %554 = vmatmul.mubr.f32.gmra.mxu0 %v332
        %v555 = vpop.f32.mrf.mxu0
        %v556 = vadd.f32 0.0, %v555
        %v557 = vpop.f32.mrf.mxu0
        %558 = vmatprep.mubr.f32.mxu0 %v335
        %559 = vmatmul.mubr.f32.gmra.mxu0 %v334
        %v560 = vpop.f32.mrf.mxu0
        %v561 = vadd.f32 0.0, %v560
        %v562 = vpop.f32.mrf.mxu0
        %563 = vmatprep.mubr.f32.mxu0 %v337
        %564 = vmatmul.mubr.f32.gmra.mxu0 %v336
        %v565 = vpop.f32.mrf.mxu0
        %v566 = vadd.f32 0.0, %v565
        %v567 = vpop.f32.mrf.mxu0
        %568 = vmatprep.mubr.f32.mxu0 %v339
        %569 = vmatmul.mubr.f32.gmra.mxu0 %v338
        %v570 = vpop.f32.mrf.mxu0
        %v571 = vadd.f32 0.0, %v570
        %v572 = vpop.f32.mrf.mxu0
        %573 = vmatprep.mubr.f32.mxu0 %v341
        %574 = vmatmul.mubr.f32.gmra.mxu0 %v340
        %v575 = vpop.f32.mrf.mxu0
        %v576 = vadd.f32 0.0, %v575
        %v577 = vpop.f32.mrf.mxu0
        %578 = vmatprep.mubr.f32.mxu0 %v343
        %579 = vmatmul.mubr.f32.gmra.mxu0 %v342
        %v580 = vpop.f32.mrf.mxu0
        %v581 = vadd.f32 0.0, %v580
        %v582 = vpop.f32.mrf.mxu0
        %583 = vmatprep.mubr.f32.mxu0 %v345
        %584 = vmatmul.mubr.f32.gmra.mxu0 %v344
        %v585 = vpop.f32.mrf.mxu0
        %v586 = vadd.f32 0.0, %v585
        %v587 = vpop.f32.mrf.mxu0
        %588 = vmatprep.mubr.f32.mxu0 %v347
        %589 = vmatmul.mubr.f32.gmra.mxu0 %v346
        %v590 = vpop.f32.mrf.mxu0
        %v591 = vadd.f32 0.0, %v590
        %v592 = vpop.f32.mrf.mxu0
        %593 = vmatprep.mubr.f32.mxu0 %v349
        %594 = vmatmul.mubr.f32.gmra.mxu0 %v348
        %v595 = vpop.f32.mrf.mxu0
        %v596 = vadd.f32 0.0, %v595
        %v597 = vpop.f32.mrf.mxu0
        %598 = vmatprep.mubr.f32.mxu0 %v351
        %599 = vmatmul.mubr.f32.gmra.mxu0 %v350
        %v600 = vpop.f32.mrf.mxu0
        %v601 = vadd.f32 0.0, %v600
        %v602 = vpop.f32.mrf.mxu0
        %603 = vmatprep.mubr.f32.mxu0 %v353
        %604 = vmatmul.mubr.f32.gmra.mxu0 %v352
        %v605 = vpop.f32.mrf.mxu0
        %v606 = vadd.f32 0.0, %v605
        %v607 = vpop.f32.mrf.mxu0
        %608 = vmatprep.mubr.f32.mxu0 %v355
        %609 = vmatmul.mubr.f32.gmra.mxu0 %v354
        %v610 = vpop.f32.mrf.mxu0
        %v611 = vadd.f32 0.0, %v610
        %v612 = vpop.f32.mrf.mxu0
        %613 = vmatprep.mubr.f32.mxu0 %v357
        %614 = vmatmul.mubr.f32.gmra.mxu0 %v356
        %v615 = vpop.f32.mrf.mxu0
        %v616 = vadd.f32 0.0, %v615
        %v617 = vpop.f32.mrf.mxu0
        %618 = vmatprep.mubr.f32.mxu0 %v359
        %619 = vmatmul.mubr.f32.gmra.mxu0 %v358
        %v620 = vpop.f32.mrf.mxu0
        %v621 = vadd.f32 0.0, %v620
        %v622 = vpop.f32.mrf.mxu0
        %623 = vmatprep.mubr.f32.mxu0 %v361
        %624 = vmatmul.mubr.f32.gmra.mxu0 %v360
        %v625 = vpop.f32.mrf.mxu0
        %v626 = vadd.f32 0.0, %v625
        %v627 = vpop.f32.mrf.mxu0
        %628 = vmatprep.mubr.f32.mxu0 %v363
        %629 = vmatmul.mubr.f32.gmra.mxu0 %v362
        %v630 = vpop.f32.mrf.mxu0
        %v631 = vadd.f32 0.0, %v630
        %v632 = vpop.f32.mrf.mxu0
        %633 = vmatprep.mubr.f32.mxu0 %v365
        %634 = vmatmul.mubr.f32.gmra.mxu0 %v364
        %v635 = vpop.f32.mrf.mxu0
        %v636 = vadd.f32 0.0, %v635
        %v637 = vpop.f32.mrf.mxu0
        %638 = vmatprep.mubr.f32.mxu0 %v367
        %639 = vmatmul.mubr.f32.gmra.mxu0 %v366
        %v640 = vpop.f32.mrf.mxu0
        %v641 = vadd.f32 0.0, %v640
        %v642 = vpop.f32.mrf.mxu0
        %643 = vmatprep.mubr.f32.mxu0 %v369
        %644 = vmatmul.mubr.f32.gmra.mxu0 %v368
        %v645 = vpop.f32.mrf.mxu0
        %v646 = vadd.f32 0.0, %v645
        %v647 = vpop.f32.mrf.mxu0
        %648 = vmatprep.mubr.f32.mxu0 %v371
        %649 = vmatmul.mubr.f32.gmra.mxu0 %v370
        %v650 = vpop.f32.mrf.mxu0
        %v651 = vadd.f32 0.0, %v650
        %v652 = vpop.f32.mrf.mxu0
        %653 = vmatprep.mubr.f32.mxu0 %v373
        %654 = vmatmul.mubr.f32.gmra.mxu0 %v372
        %v655 = vpop.f32.mrf.mxu0
        %v656 = vadd.f32 0.0, %v655
        %v657 = vpop.f32.mrf.mxu0
        %658 = vmatprep.mubr.f32.mxu0 %v375
        %659 = vmatmul.mubr.f32.gmra.mxu0 %v374
        %v660 = vpop.f32.mrf.mxu0
        %v661 = vadd.f32 0.0, %v660
        %v662 = vpop.f32.mrf.mxu0
        %663 = vmatprep.mubr.f32.mxu0 %v377
        %664 = vmatmul.mubr.f32.gmra.mxu0 %v376
        %v665 = vpop.f32.mrf.mxu0
        %v666 = vadd.f32 0.0, %v665
        %v667 = vpop.f32.mrf.mxu0
        %668 = vdwg.mxu0
        %v669 = vadd.f32 %v412, %v511
        %v670 = vadd.f32 %v413, %v516
        %v671 = vadd.f32 %v414, %v521
        %v672 = vadd.f32 %v415, %v526
        %v673 = vadd.f32 %v416, %v531
        %v674 = vadd.f32 %v417, %v536
        %v675 = vadd.f32 %v418, %v541
        %v676 = vadd.f32 %v419, %v546
        %v677 = vadd.f32 %v420, %v551
        %v678 = vadd.f32 %v421, %v556
        %v679 = vadd.f32 %v422, %v561
        %v680 = vadd.f32 %v423, %v566
        %v681 = vadd.f32 %v424, %v571
        %v682 = vadd.f32 %v425, %v576
        %v683 = vadd.f32 %v426, %v581
        %v684 = vadd.f32 %v427, %v586
        %v685 = vadd.f32 %v428, %v591
        %v686 = vadd.f32 %v429, %v596
        %v687 = vadd.f32 %v430, %v601
        %v688 = vadd.f32 %v431, %v606
        %v689 = vadd.f32 %v432, %v611
        %v690 = vadd.f32 %v433, %v616
        %v691 = vadd.f32 %v434, %v621
        %v692 = vadd.f32 %v435, %v626
        %v693 = vadd.f32 %v436, %v631
        %v694 = vadd.f32 %v437, %v636
        %v695 = vadd.f32 %v438, %v641
        %v696 = vadd.f32 %v439, %v646
        %v697 = vadd.f32 %v440, %v651
        %v698 = vadd.f32 %v441, %v656
        %v699 = vadd.f32 %v442, %v661
        %v700 = vadd.f32 %v443, %v666
        %701 = vst [vmem:[%s266] sm:$0xff] %v669
        %702 = vst [vmem:[%s266 + $0x8] sm:$0xff] %v670
        %703 = vst [vmem:[%s266 + $0x10] sm:$0xff] %v671
        %704 = vst [vmem:[%s266 + $0x18] sm:$0xff] %v672
        %705 = vst [vmem:[%s266 + $0x20] sm:$0xff] %v673
        %706 = vst [vmem:[%s266 + $0x28] sm:$0xff] %v674
        %707 = vst [vmem:[%s266 + $0x30] sm:$0xff] %v675
        %708 = vst [vmem:[%s266 + $0x38] sm:$0xff] %v676
        %709 = vst [vmem:[%s266 + $0x40] sm:$0xff] %v677
        %710 = vst [vmem:[%s266 + $0x48] sm:$0xff] %v678
        %711 = vst [vmem:[%s266 + $0x50] sm:$0xff] %v679
        %712 = vst [vmem:[%s266 + $0x58] sm:$0xff] %v680
        %713 = vst [vmem:[%s266 + $0x60] sm:$0xff] %v681
        %714 = vst [vmem:[%s266 + $0x68] sm:$0xff] %v682
        %715 = vst [vmem:[%s266 + $0x70] sm:$0xff] %v683
        %716 = vst [vmem:[%s266 + $0x78] sm:$0xff] %v684
        %717 = vst [vmem:[%s266 + $0x80] sm:$0xff] %v685
        %718 = vst [vmem:[%s266 + $0x88] sm:$0xff] %v686
        %719 = vst [vmem:[%s266 + $0x90] sm:$0xff] %v687
        %720 = vst [vmem:[%s266 + $0x98] sm:$0xff] %v688
        %721 = vst [vmem:[%s266 + $0xa0] sm:$0xff] %v689
        %722 = vst [vmem:[%s266 + $0xa8] sm:$0xff] %v690
        %723 = vst [vmem:[%s266 + $0xb0] sm:$0xff] %v691
        %724 = vst [vmem:[%s266 + $0xb8] sm:$0xff] %v692
        %725 = vst [vmem:[%s266 + $0xc0] sm:$0xff] %v693
        %726 = vst [vmem:[%s266 + $0xc8] sm:$0xff] %v694
        %727 = vst [vmem:[%s266 + $0xd0] sm:$0xff] %v695
        %728 = vst [vmem:[%s266 + $0xd8] sm:$0xff] %v696
        %729 = vst [vmem:[%s266 + $0xe0] sm:$0xff] %v697
        %730 = vst [vmem:[%s266 + $0xe8] sm:$0xff] %v698
        %731 = vst [vmem:[%s266 + $0xf0] sm:$0xff] %v699
        %732 = vst [vmem:[%s266 + $0xf8] sm:$0xff] %v700
        %vm733 = vcmp.ne.f32.partialorder %v314, 0.0
        %vm734 = vcmp.ne.f32.partialorder %v315, 0.0
        %vm735 = vcmp.ne.f32.partialorder %v316, 0.0
        %vm736 = vcmp.ne.f32.partialorder %v317, 0.0
        %vm737 = vcmp.ne.f32.partialorder %v318, 0.0
        %vm738 = vcmp.ne.f32.partialorder %v319, 0.0
        %vm739 = vcmp.ne.f32.partialorder %v320, 0.0
        %vm740 = vcmp.ne.f32.partialorder %v321, 0.0
        %vm741 = vcmp.ne.f32.partialorder %v322, 0.0
        %vm742 = vcmp.ne.f32.partialorder %v323, 0.0
        %vm743 = vcmp.ne.f32.partialorder %v324, 0.0
        %vm744 = vcmp.ne.f32.partialorder %v325, 0.0
        %vm745 = vcmp.ne.f32.partialorder %v326, 0.0
        %vm746 = vcmp.ne.f32.partialorder %v327, 0.0
        %vm747 = vcmp.ne.f32.partialorder %v328, 0.0
        %vm748 = vcmp.ne.f32.partialorder %v329, 0.0
        %vm749 = vcmp.ne.f32.partialorder %v330, 0.0
        %vm750 = vcmp.ne.f32.partialorder %v331, 0.0
        %vm751 = vcmp.ne.f32.partialorder %v332, 0.0
        %vm752 = vcmp.ne.f32.partialorder %v333, 0.0
        %vm753 = vcmp.ne.f32.partialorder %v334, 0.0
        %vm754 = vcmp.ne.f32.partialorder %v335, 0.0
        %vm755 = vcmp.ne.f32.partialorder %v336, 0.0
        %vm756 = vcmp.ne.f32.partialorder %v337, 0.0
        %vm757 = vcmp.ne.f32.partialorder %v338, 0.0
        %vm758 = vcmp.ne.f32.partialorder %v339, 0.0
        %vm759 = vcmp.ne.f32.partialorder %v340, 0.0
        %vm760 = vcmp.ne.f32.partialorder %v341, 0.0
        %vm761 = vcmp.ne.f32.partialorder %v342, 0.0
        %vm762 = vcmp.ne.f32.partialorder %v343, 0.0
        %vm763 = vcmp.ne.f32.partialorder %v344, 0.0
        %vm764 = vcmp.ne.f32.partialorder %v345, 0.0
        %vm765 = vcmp.ne.f32.partialorder %v346, 0.0
        %vm766 = vcmp.ne.f32.partialorder %v347, 0.0
        %vm767 = vcmp.ne.f32.partialorder %v348, 0.0
        %vm768 = vcmp.ne.f32.partialorder %v349, 0.0
        %vm769 = vcmp.ne.f32.partialorder %v350, 0.0
        %vm770 = vcmp.ne.f32.partialorder %v351, 0.0
        %vm771 = vcmp.ne.f32.partialorder %v352, 0.0
        %vm772 = vcmp.ne.f32.partialorder %v353, 0.0
        %vm773 = vcmp.ne.f32.partialorder %v354, 0.0
        %vm774 = vcmp.ne.f32.partialorder %v355, 0.0
        %vm775 = vcmp.ne.f32.partialorder %v356, 0.0
        %vm776 = vcmp.ne.f32.partialorder %v357, 0.0
        %vm777 = vcmp.ne.f32.partialorder %v358, 0.0
        %vm778 = vcmp.ne.f32.partialorder %v359, 0.0
        %vm779 = vcmp.ne.f32.partialorder %v360, 0.0
        %vm780 = vcmp.ne.f32.partialorder %v361, 0.0
        %vm781 = vcmp.ne.f32.partialorder %v362, 0.0
        %vm782 = vcmp.ne.f32.partialorder %v363, 0.0
        %vm783 = vcmp.ne.f32.partialorder %v364, 0.0
        %vm784 = vcmp.ne.f32.partialorder %v365, 0.0
        %vm785 = vcmp.ne.f32.partialorder %v366, 0.0
        %vm786 = vcmp.ne.f32.partialorder %v367, 0.0
        %vm787 = vcmp.ne.f32.partialorder %v368, 0.0
        %vm788 = vcmp.ne.f32.partialorder %v369, 0.0
        %vm789 = vcmp.ne.f32.partialorder %v370, 0.0
        %vm790 = vcmp.ne.f32.partialorder %v371, 0.0
        %vm791 = vcmp.ne.f32.partialorder %v372, 0.0
        %vm792 = vcmp.ne.f32.partialorder %v373, 0.0
        %vm793 = vcmp.ne.f32.partialorder %v374, 0.0
        %vm794 = vcmp.ne.f32.partialorder %v375, 0.0
        %vm795 = vcmp.ne.f32.partialorder %v376, 0.0
        %vm796 = vcmp.ne.f32.partialorder %v377, 0.0
        %v797 = vsel %vm733, 1, 0
        %v798 = vsel %vm734, 1, 0
        %v799 = vsel %vm735, 1, 0
        %v800 = vsel %vm736, 1, 0
        %v801 = vsel %vm737, 1, 0
        %v802 = vsel %vm738, 1, 0
        %v803 = vsel %vm739, 1, 0
        %v804 = vsel %vm740, 1, 0
        %v805 = vsel %vm741, 1, 0
        %v806 = vsel %vm742, 1, 0
        %v807 = vsel %vm743, 1, 0
        %v808 = vsel %vm744, 1, 0
        %v809 = vsel %vm745, 1, 0
        %v810 = vsel %vm746, 1, 0
        %v811 = vsel %vm747, 1, 0
        %v812 = vsel %vm748, 1, 0
        %v813 = vsel %vm749, 1, 0
        %v814 = vsel %vm750, 1, 0
        %v815 = vsel %vm751, 1, 0
        %v816 = vsel %vm752, 1, 0
        %v817 = vsel %vm753, 1, 0
        %v818 = vsel %vm754, 1, 0
        %v819 = vsel %vm755, 1, 0
        %v820 = vsel %vm756, 1, 0
        %v821 = vsel %vm757, 1, 0
        %v822 = vsel %vm758, 1, 0
        %v823 = vsel %vm759, 1, 0
        %v824 = vsel %vm760, 1, 0
        %v825 = vsel %vm761, 1, 0
        %v826 = vsel %vm762, 1, 0
        %v827 = vsel %vm763, 1, 0
        %v828 = vsel %vm764, 1, 0
        %v829 = vsel %vm765, 1, 0
        %v830 = vsel %vm766, 1, 0
        %v831 = vsel %vm767, 1, 0
        %v832 = vsel %vm768, 1, 0
        %v833 = vsel %vm769, 1, 0
        %v834 = vsel %vm770, 1, 0
        %v835 = vsel %vm771, 1, 0
        %v836 = vsel %vm772, 1, 0
        %v837 = vsel %vm773, 1, 0
        %v838 = vsel %vm774, 1, 0
        %v839 = vsel %vm775, 1, 0
        %v840 = vsel %vm776, 1, 0
        %v841 = vsel %vm777, 1, 0
        %v842 = vsel %vm778, 1, 0
        %v843 = vsel %vm779, 1, 0
        %v844 = vsel %vm780, 1, 0
        %v845 = vsel %vm781, 1, 0
        %v846 = vsel %vm782, 1, 0
        %v847 = vsel %vm783, 1, 0
        %v848 = vsel %vm784, 1, 0
        %v849 = vsel %vm785, 1, 0
        %v850 = vsel %vm786, 1, 0
        %v851 = vsel %vm787, 1, 0
        %v852 = vsel %vm788, 1, 0
        %v853 = vsel %vm789, 1, 0
        %v854 = vsel %vm790, 1, 0
        %v855 = vsel %vm791, 1, 0
        %v856 = vsel %vm792, 1, 0
        %v857 = vsel %vm793, 1, 0
        %v858 = vsel %vm794, 1, 0
        %v859 = vsel %vm795, 1, 0
        %v860 = vsel %vm796, 1, 0
        %v861 = vcvt.s32.f32 %v797
        %v862 = vcvt.s32.f32 %v798
        %v863 = vcvt.s32.f32 %v799
        %v864 = vcvt.s32.f32 %v800
        %v865 = vcvt.s32.f32 %v801
        %v866 = vcvt.s32.f32 %v802
        %v867 = vcvt.s32.f32 %v803
        %v868 = vcvt.s32.f32 %v804
        %v869 = vcvt.s32.f32 %v805
        %v870 = vcvt.s32.f32 %v806
        %v871 = vcvt.s32.f32 %v807
        %v872 = vcvt.s32.f32 %v808
        %v873 = vcvt.s32.f32 %v809
        %v874 = vcvt.s32.f32 %v810
        %v875 = vcvt.s32.f32 %v811
        %v876 = vcvt.s32.f32 %v812
        %v877 = vcvt.s32.f32 %v813
        %v878 = vcvt.s32.f32 %v814
        %v879 = vcvt.s32.f32 %v815
        %v880 = vcvt.s32.f32 %v816
        %v881 = vcvt.s32.f32 %v817
        %v882 = vcvt.s32.f32 %v818
        %v883 = vcvt.s32.f32 %v819
        %v884 = vcvt.s32.f32 %v820
        %v885 = vcvt.s32.f32 %v821
        %v886 = vcvt.s32.f32 %v822
        %v887 = vcvt.s32.f32 %v823
        %v888 = vcvt.s32.f32 %v824
        %v889 = vcvt.s32.f32 %v825
        %v890 = vcvt.s32.f32 %v826
        %v891 = vcvt.s32.f32 %v827
        %v892 = vcvt.s32.f32 %v828
        %v893 = vcvt.s32.f32 %v829
        %v894 = vcvt.s32.f32 %v830
        %v895 = vcvt.s32.f32 %v831
        %v896 = vcvt.s32.f32 %v832
        %v897 = vcvt.s32.f32 %v833
        %v898 = vcvt.s32.f32 %v834
        %v899 = vcvt.s32.f32 %v835
        %v900 = vcvt.s32.f32 %v836
        %v901 = vcvt.s32.f32 %v837
        %v902 = vcvt.s32.f32 %v838
        %v903 = vcvt.s32.f32 %v839
        %v904 = vcvt.s32.f32 %v840
        %v905 = vcvt.s32.f32 %v841
        %v906 = vcvt.s32.f32 %v842
        %v907 = vcvt.s32.f32 %v843
        %v908 = vcvt.s32.f32 %v844
        %v909 = vcvt.s32.f32 %v845
        %v910 = vcvt.s32.f32 %v846
        %v911 = vcvt.s32.f32 %v847
        %v912 = vcvt.s32.f32 %v848
        %v913 = vcvt.s32.f32 %v849
        %v914 = vcvt.s32.f32 %v850
        %v915 = vcvt.s32.f32 %v851
        %v916 = vcvt.s32.f32 %v852
        %v917 = vcvt.s32.f32 %v853
        %v918 = vcvt.s32.f32 %v854
        %v919 = vcvt.s32.f32 %v855
        %v920 = vcvt.s32.f32 %v856
        %v921 = vcvt.s32.f32 %v857
        %v922 = vcvt.s32.f32 %v858
        %v923 = vcvt.s32.f32 %v859
        %v924 = vcvt.s32.f32 %v860
        %v925 = vadd.f32 %v861, %v863
        %v926 = vadd.f32 %v925, %v865
        %v927 = vadd.f32 %v926, %v867
        %v928 = vadd.f32 %v927, %v869
        %v929 = vadd.f32 %v928, %v871
        %v930 = vadd.f32 %v929, %v873
        %v931 = vadd.f32 %v930, %v875
        %v932 = vadd.f32 %v931, %v877
        %v933 = vadd.f32 %v932, %v879
        %v934 = vadd.f32 %v933, %v881
        %v935 = vadd.f32 %v934, %v883
        %v936 = vadd.f32 %v935, %v885
        %v937 = vadd.f32 %v936, %v887
        %v938 = vadd.f32 %v937, %v889
        %v939 = vadd.f32 %v938, %v891
        %v940 = vadd.f32 %v939, %v893
        %v941 = vadd.f32 %v940, %v895
        %v942 = vadd.f32 %v941, %v897
        %v943 = vadd.f32 %v942, %v899
        %v944 = vadd.f32 %v943, %v901
        %v945 = vadd.f32 %v944, %v903
        %v946 = vadd.f32 %v945, %v905
        %v947 = vadd.f32 %v946, %v907
        %v948 = vadd.f32 %v947, %v909
        %v949 = vadd.f32 %v948, %v911
        %v950 = vadd.f32 %v949, %v913
        %v951 = vadd.f32 %v950, %v915
        %v952 = vadd.f32 %v951, %v917
        %v953 = vadd.f32 %v952, %v919
        %v954 = vadd.f32 %v953, %v921
        %v955 = vadd.f32 %v954, %v923
        %v956 = vrot.slane %v955, 4
        %v957 = vadd.f32 %v955, %v956
        %v958 = vrot.slane %v957, 2
        %v959 = vadd.f32 %v957, %v958
        %v960 = vrot.slane %v959, 1
        %v961 = vadd.f32 %v959, %v960
        %v962 = vadd.f32 %v862, %v864
        %v963 = vadd.f32 %v962, %v866
        %v964 = vadd.f32 %v963, %v868
        %v965 = vadd.f32 %v964, %v870
        %v966 = vadd.f32 %v965, %v872
        %v967 = vadd.f32 %v966, %v874
        %v968 = vadd.f32 %v967, %v876
        %v969 = vadd.f32 %v968, %v878
        %v970 = vadd.f32 %v969, %v880
        %v971 = vadd.f32 %v970, %v882
        %v972 = vadd.f32 %v971, %v884
        %v973 = vadd.f32 %v972, %v886
        %v974 = vadd.f32 %v973, %v888
        %v975 = vadd.f32 %v974, %v890
        %v976 = vadd.f32 %v975, %v892
        %v977 = vadd.f32 %v976, %v894
        %v978 = vadd.f32 %v977, %v896
        %v979 = vadd.f32 %v978, %v898
        %v980 = vadd.f32 %v979, %v900
        %v981 = vadd.f32 %v980, %v902
        %v982 = vadd.f32 %v981, %v904
        %v983 = vadd.f32 %v982, %v906
        %v984 = vadd.f32 %v983, %v908
        %v985 = vadd.f32 %v984, %v910
        %v986 = vadd.f32 %v985, %v912
        %v987 = vadd.f32 %v986, %v914
        %v988 = vadd.f32 %v987, %v916
        %v989 = vadd.f32 %v988, %v918
        %v990 = vadd.f32 %v989, %v920
        %v991 = vadd.f32 %v990, %v922
        %v992 = vadd.f32 %v991, %v924
        %v993 = vrot.slane %v992, 4
        %v994 = vadd.f32 %v992, %v993
        %v995 = vrot.slane %v994, 2
        %v996 = vadd.f32 %v994, %v995
        %v997 = vrot.slane %v996, 1
        %v998 = vadd.f32 %v996, %v997
        %v1001 = vcombine.low %v961, %v998
        %v1003 = vunpack.c.l.s4 1966171168
        %v1004 = vunpack.c.0.s8 %v1003
        %v1005 = vlaneseq
        %v1006 = vshrl.u32 %v1005, 7
        %v1007 = vsub.s32 %v1004, %v1006
        %v1008 = vrot.slane %v1001, %v1007
        %v1010 = vunpack.c.l.s4 1966171168
        %v1011 = vunpack.c.0.s8 %v1010
        %v1012 = vlaneseq
        %v1013 = vshrl.u32 %v1012, 7
        %v1014 = vsub.s32 %v1011, %v1013
        %v1015 = vrot.slane %v1008, %v1014
        %v1017 = vlaneseq
        %vm1018 = vcmp.ge.s32.totalorder %v1017, 0
        %vm1019 = vcmp.lt.s32.totalorder %v1017, 256
        %vm1020 = vmand %vm1018, %vm1019
        %1021 = vst.msk [vmem:[%s273] sm:$0x3] %vm1020, %v1015
        %s1022 = sand.u32 %s112, 1
        %s1023 = scalar_lea.sflag [#allocation4], %s1022
        %s1024 = sand.u32 %s112, 1
        %s1025 = smul.addr %s1024, 256
        %s1026 = scalar_lea.vmem [#allocation7], %s1025
        %s1027 = sand.u32 %s142, 1
        %s1028 = scalar_lea.sflag [#allocation9], %s1027
        %s1029 = sand.u32 %s142, 1
        %s1030 = smul.addr %s1029, 2
        %s1031 = scalar_lea.vmem [#allocation8], %s1030
        // Predicated region
        $region41: #{tpu_custom_call.1} parent=27 // pred_check
          %p1032 = pneg %p122
        $region42: #{tpu_custom_call.1} parent=27 // pred_check_branch
          %1034 = sbr.rel (%p1032) target = $region44
        $region43: #{tpu_custom_call.1} parent=27 // pred_region
          %s1035 = smul.u32 32, %s33
          %s1037 = ssub.s32 4096, 4096
          %1038 = vsyncadd %s1023, %s1037
          %s1039 = smul.addr %s32, 32
          %s1040 = sadd.s32 %s1035, %s1039
          %s1041 = smul.addr %s1040, 128
          %s1042 = scalar_lea.hbm %s2, %s1041
          %s1043 = sshll.u32 %s1026, 4
          %s1044 = int_to_ptr.vmem [resolvable:$true] %s1043
          %1049 = dma.vmem_to_hbm [thread:$0]  %s1044, 4096, %s1042, %s1023, 128, 128, 8
        $region44: #{tpu_custom_call.1} parent=27 // pred_fallthru
          _
        // Predicated region
        $region45: #{tpu_custom_call.1} parent=27 // pred_check
          %p1050 = pneg %p152
        $region46: #{tpu_custom_call.1} parent=27 // pred_check_branch
          %1052 = sbr.rel (%p1050) target = $region48
        $region47: #{tpu_custom_call.1} parent=27 // pred_region
          %s1053 = smul.u32 2, %s34
          %s1055 = ssub.s32 32, 32
          %1056 = vsyncadd %s1028, %s1055
          %s1057 = smul.addr %s33, 2
          %s1058 = sadd.s32 %s1053, %s1057
          %s1059 = smul.addr %s32, 2
          %s1060 = sadd.s32 %s1058, %s1059
          %s1061 = smul.addr %s1060, 16
          %s1062 = scalar_lea.hbm %s3, %s1061
          %s1064 = sshll.u32 %s1031, 4
          %s1065 = int_to_ptr.vmem [resolvable:$true] %s1064
          %1067 = dma.vmem_to_hbm [thread:$0]  %s1065, 32, %s1062, %s1028
        $region48: #{tpu_custom_call.1} parent=27 // pred_fallthru
          _
      $region28: #{tpu_custom_call.1} parent=5 // pred_fallthru
        _
      %p1068 = scmp.le.s32.totalorder 2, %s22
      // Predicated region
      $region49: #{tpu_custom_call.1} parent=5 // pred_check
        %p1069 = pneg %p1068
      $region50: #{tpu_custom_call.1} parent=5 // pred_check_branch
        %1071 = sbr.rel (%p1069) target = $region52
      $region51: #{tpu_custom_call.1} parent=5 // pred_region
        %s1072 = ssub.s32 %s22, 2
        // Predicated region
        $region53: #{tpu_custom_call.1} parent=51 // pred_check
          %p1073 = pneg %p128
        $region54: #{tpu_custom_call.1} parent=51 // pred_check_branch
          %1075 = sbr.rel (%p1073) target = $region56
        $region55: #{tpu_custom_call.1} parent=51 // pred_region
          %s1076 = sand.u32 %s113, 1
          %s1077 = scalar_lea.sflag [#allocation4], %s1076
          %s1078 = sand.u32 %s113, 1
          %s1079 = smul.addr %s1078, 256
          %s1080 = scalar_lea.vmem [#allocation7], %s1079
          %1081 = dma.done %s1077, 4096
        $region56: #{tpu_custom_call.1} parent=51 // pred_fallthru
          _
        // Predicated region
        $region57: #{tpu_custom_call.1} parent=51 // pred_check
          %p1082 = pneg %p158
        $region58: #{tpu_custom_call.1} parent=51 // pred_check_branch
          %1084 = sbr.rel (%p1082) target = $region60
        $region59: #{tpu_custom_call.1} parent=51 // pred_region
          %s1085 = sand.u32 %s143, 1
          %s1086 = scalar_lea.sflag [#allocation9], %s1085
          %s1087 = sand.u32 %s143, 1
          %s1088 = smul.addr %s1087, 2
          %s1089 = scalar_lea.vmem [#allocation8], %s1088
          %1090 = dma.done %s1086, 32
        $region60: #{tpu_custom_call.1} parent=51 // pred_fallthru
          _
      $region52: #{tpu_custom_call.1} parent=5 // pred_fallthru
        _
    $region6: #{tpu_custom_call.1} parent=1 // loop_footer
      %s26 = sadd.s32 1, %s22
    $region7: #{tpu_custom_call.1} parent=1 // loop_footer_branch
      %21 = sbr.rel target = $region3
    $region8: #{tpu_custom_call.1} parent=1 // loop_exit
      _
    %1091 = vsyncpa [#allocation3], 1
    %s1092 = scalar_lea.sflag [#allocation3], 1
    %1093 = vsyncpa %s1092, 1
    %1094 = vsyncpa [#allocation6], 1
    %s1095 = scalar_lea.sflag [#allocation6], 1
    %1096 = vsyncpa %s1095, 1
    %1097 = vsyncpa [#allocation4], 1
    %s1098 = scalar_lea.sflag [#allocation4], 1
    %1099 = vsyncpa %s1098, 1
    %1100 = vsyncpa [#allocation9], 1
    %s1101 = scalar_lea.sflag [#allocation9], 1
    %1102 = vsyncpa %s1101, 1

</llo_original>
